<compile_context>
chip_gen: v5e
topology: v5e:2x2
jax: 0.10.0
libtpu: 0.0.40
codegen_flags: <defaults>
</compile_context>

<pallas_src>
import functools

import jax
import jax.numpy as jnp
from jax.experimental import pallas as pl
from jax.experimental.pallas import tpu as pltpu

LRELU_SLOPE = 0.1


def _round_up(x, m):
    return (x + m - 1) // m * m


def _lrelu(x):
    return jnp.where(x >= 0, x, LRELU_SLOPE * x)


def _fused_dilated_conv(a, w_ref, b_ref, dilation, K):
    """'Same' dilated conv1d on an extended (C_in, W) f32 tile as ONE MXU matmul.

    a      : (C_in, W) f32 activation (already LeakyReLU'd; zero outside valid columns)
    w_ref  : (C_out, K*C_in) bf16 ref, tap-major fused weight:
             w_fused[o, k*C_in + i] == w_torch[o, i, k]
    b_ref  : (C_out, 1) f32 ref
    Returns (C_out, W) f32 (bias added, NOT boundary-masked).
    """
    C_in, W = a.shape
    r = dilation * (K - 1) // 2
    a_bf = a.astype(jnp.bfloat16)                            # cast once, before shifts
    if r > 0:
        z = jnp.zeros((C_in, r), jnp.bfloat16)
        a_pad = jnp.concatenate([z, a_bf, z], axis=1)        # (C_in, W + 2r) bf16
    else:
        a_pad = a_bf
    # Stack the K shifted views along the contraction axis -> a single big matmul
    # (3x larger contraction dim, 1/3 the MXU weight pushes vs per-tap dots).
    rhs = jnp.concatenate(
        [a_pad[:, k * dilation: k * dilation + W] for k in range(K)],
        axis=0)                                              # (K*C_in, W) bf16
    out = jnp.dot(w_ref[...], rhs, preferred_element_type=jnp.float32)
    return out + b_ref[...]


def _resblock_kernel(x_ref,
                     w1a_ref, b1a_ref, w1b_ref, b1b_ref,
                     w2a_ref, b2a_ref, w2b_ref, b2b_ref,
                     o_ref, *, K, dil1, dil2, t_tile, halo, t_valid):
    t = pl.program_id(1)
    x = x_ref[0, 0].astype(jnp.float32)                     # (C, W) extended tile

    W = x.shape[-1]
    # Hoisted boundary mask (built once per tile, reused by the convs): zero out columns
    # outside the true sequence [0, T) so each conv sees exactly PyTorch's zero padding
    # (bias would otherwise contaminate the zero-padded halo columns).
    col = jax.lax.broadcasted_iota(jnp.int32, (1, W), 1)
    g = col + (t * t_tile - halo)                           # global time index
    mask = ((g >= 0) & (g < t_valid)).astype(jnp.float32)   # (1, W)

    # --- dilation1 branch: LReLU -> conv(dil1) -> LReLU -> conv(1) ---
    h = _fused_dilated_conv(_lrelu(x), w1a_ref, b1a_ref, dil1, K) * mask
    h = _fused_dilated_conv(_lrelu(h), w1b_ref, b1b_ref, 1, K) * mask
    x = x + h

    # --- dilation2 branch: LReLU -> conv(dil2) -> LReLU -> conv(1) ---
    h = _fused_dilated_conv(_lrelu(x), w2a_ref, b2a_ref, dil2, K) * mask
    # Last conv: no mask needed -- its out-of-range columns are never read (the halo is
    # discarded below and the wrapper slices the padded tail back to [:T]).
    h = _fused_dilated_conv(_lrelu(h), w2b_ref, b2b_ref, 1, K)
    x = x + h

    # Only the central t_tile columns are exact (overlap-save) -> write those.
    o_ref[0] = x[:, halo:halo + t_tile].astype(o_ref.dtype)


def residual_block(x, params, *, kernel_size=3, dilation=(1, 3), t_tile=1024):
    """x: (B, C, T) float32.  params: PyTorch-layout weights w1a/w1b/w2a/w2b (C, C, K)
    (already weight-normed) and biases b1a/b1b/b2a/b2b (C,)."""
    B, C, T = x.shape
    K = kernel_size
    assert K % 2 == 1, "kernel_size must be odd to match PyTorch 'same' padding"
    assert t_tile % 128 == 0
    dil1, dil2 = dilation

    # Receptive-field half-width of the whole 4-conv chain -> halo per tile side.
    halo = (K - 1) // 2 * (dil1 + 1 + dil2 + 1)

    TT = min(t_tile, _round_up(T, 128))        # time tile (multiple of 128, lane-dense out)
    nT = pl.cdiv(T, TT)
    T_pad = nT * TT
    W = TT + 2 * halo

    # Zero-pad time: `halo` zeros on each side (true-sequence padding for edge tiles) plus
    # round T up to a multiple of TT on the right.  Then build overlapping windows
    # (overlap-save).  Extra HBM traffic is only 2*halo/TT of the input -- negligible.
    x_pad = jnp.pad(x, ((0, 0), (0, 0), (halo, (T_pad - T) + halo)))
    x_ext = jnp.stack(
        [x_pad[:, :, t * TT: t * TT + W] for t in range(nT)], axis=1)  # (B, nT, C, W)

    def fuse_w(w):   # (C_out, C_in, K) f32 -> (C_out, K*C_in) bf16, lane-dense, tap-major
        return jnp.transpose(w, (0, 2, 1)).reshape(C, K * C).astype(jnp.bfloat16)

    def col_b(b):    # (C,) -> (C, 1) f32 for in-kernel broadcast
        return b.reshape(C, 1).astype(jnp.float32)

    wb_args = []
    for n in ("1a", "1b", "2a", "2b"):
        wb_args.append(fuse_w(params["w" + n]))
        wb_args.append(col_b(params["b" + n]))

    x_spec = pl.BlockSpec((1, 1, C, W), lambda b, t: (b, t, 0, 0))
    w_spec = pl.BlockSpec((C, K * C), lambda b, t: (0, 0))   # constant block index ->
    b_spec = pl.BlockSpec((C, 1), lambda b, t: (0, 0))       # fetched once, reused
    o_spec = pl.BlockSpec((1, C, TT), lambda b, t: (b, 0, t))

    kernel = functools.partial(_resblock_kernel, K=K, dil1=dil1, dil2=dil2,
                               t_tile=TT, halo=halo, t_valid=T)

    out_pad = pl.pallas_call(
        kernel,
        out_shape=jax.ShapeDtypeStruct((B, C, T_pad), x.dtype),
        grid_spec=pltpu.PrefetchScalarGridSpec(
            num_scalar_prefetch=0,
            grid=(B, nT),
            in_specs=[x_spec,
                      w_spec, b_spec, w_spec, b_spec,
                      w_spec, b_spec, w_spec, b_spec],
            out_specs=o_spec,
        ),
        compiler_params=pltpu.CompilerParams(
            dimension_semantics=("parallel", "parallel"),
            vmem_limit_bytes=64 * 1024 * 1024,   # sized so the same tiling fits v7x VMEM
        ),
    )(x_ext, *wb_args)
    return out_pad[:, :, :T]


# ----------------------------- reference (pure JAX) -----------------------------
def _conv1d_ref(x, w, b, dilation):
    # Same precision policy as the kernel: bf16 operands, f32 accumulation.
    pad = dilation * (w.shape[-1] - 1) // 2
    out = jax.lax.conv_general_dilated(
        x.astype(jnp.bfloat16), w.astype(jnp.bfloat16),
        window_strides=(1,), padding=[(pad, pad)], rhs_dilation=(dilation,),
        dimension_numbers=("NCH", "OIH", "NCH"),
        preferred_element_type=jnp.float32)
    return out + b[None, :, None]


def residual_block_ref(x, params, dilation=(1, 3)):
    h = _conv1d_ref(_lrelu(x), params["w1a"], params["b1a"], dilation[0])
    h = _conv1d_ref(_lrelu(h), params["w1b"], params["b1b"], 1)
    x = x + h
    h = _conv1d_ref(_lrelu(x), params["w2a"], params["b2a"], dilation[1])
    h = _conv1d_ref(_lrelu(h), params["w2b"], params["b2b"], 1)
    x = x + h
    return x


# ----------------------------- param init (weight-norm folded) -----------------------------
def _weight_norm(v, g):
    # PyTorch weight_norm for Conv1d: w = g * v / ||v||, norm over (in, k) per out-channel.
    norm = jnp.sqrt(jnp.sum(v * v, axis=(1, 2), keepdims=True))
    return g[:, None, None] * v / norm


def make_params(key, channels, kernel_size=3):
    ks = jax.random.split(key, 12)
    params = {}
    for i, n in enumerate(("1a", "1b", "2a", "2b")):
        v = jax.random.normal(ks[3 * i], (channels, channels, kernel_size),
                              jnp.float32) * 0.3
        g = jax.random.uniform(ks[3 * i + 1], (channels,), jnp.float32,
                               minval=0.5, maxval=1.5)
        b = jax.random.normal(ks[3 * i + 2], (channels,), jnp.float32) * 0.1
        params["w" + n] = _weight_norm(v, g)   # (C, C, K) PyTorch layout
        params["b" + n] = b                    # (C,)
    return params


if __name__ == "__main__":
    key = jax.random.PRNGKey(0)
    configs = [
        dict(B=2, C=8, T=128, t_tile=128),    # single time tile
        dict(B=1, C=16, T=200, t_tile=128),   # two tiles: halo seam + ragged end padding
        dict(B=1, C=32, T=384, t_tile=256),   # channels multiple of 8, multi-tile seam
    ]
    for cfg in configs:
        key, kx, kp = jax.random.split(key, 3)
        x = jax.random.normal(kx, (cfg["B"], cfg["C"], cfg["T"]), jnp.float32)
        params = make_params(kp, cfg["C"], kernel_size=3)

        out = residual_block(x, params, kernel_size=3, dilation=(1, 3),
                             t_tile=cfg["t_tile"])
        out = jax.block_until_ready(out)

        ref = residual_block_ref(x, params, dilation=(1, 3))
        assert out.shape == x.shape
        err = float(jnp.max(jnp.abs(out - ref)))
        assert jnp.allclose(out, ref, rtol=2e-3, atol=2e-3), err
    print("KERNEL_OK")
</pallas_src>

<mosaic_0001>
module attributes {stable_mosaic.version = 11 : i64} {
  func.func @_resblock_kernel(%arg0: i32, %arg1: i32, %arg2: memref<1x1x8x140xf32, #tpu.memory_space<vmem>>, %arg3: memref<8x24xbf16, #tpu.memory_space<vmem>>, %arg4: memref<8x1xf32, #tpu.memory_space<vmem>>, %arg5: memref<8x24xbf16, #tpu.memory_space<vmem>>, %arg6: memref<8x1xf32, #tpu.memory_space<vmem>>, %arg7: memref<8x24xbf16, #tpu.memory_space<vmem>>, %arg8: memref<8x1xf32, #tpu.memory_space<vmem>>, %arg9: memref<8x24xbf16, #tpu.memory_space<vmem>>, %arg10: memref<8x1xf32, #tpu.memory_space<vmem>>, %arg11: memref<1x8x128xf32, #tpu.memory_space<vmem>>) attributes {dimension_semantics = [#tpu.dimension_semantics<parallel>, #tpu.dimension_semantics<parallel>], iteration_bounds = array<i64: 2, 1>, scalar_prefetch = 0 : i64, scratch_operands = 0 : i64, tpu.core_type = #tpu.core_type<tc>, window_params = [{transform_indices = @transform_0, window_bounds = array<i64: 1, 1, 8, 140>}, {pipeline_mode = #tpu.pipeline_mode<synchronous>, transform_indices = @transform_1, window_bounds = array<i64: 8, 24>}, {pipeline_mode = #tpu.pipeline_mode<synchronous>, transform_indices = @transform_2, window_bounds = array<i64: 8, 1>}, {pipeline_mode = #tpu.pipeline_mode<synchronous>, transform_indices = @transform_3, window_bounds = array<i64: 8, 24>}, {pipeline_mode = #tpu.pipeline_mode<synchronous>, transform_indices = @transform_4, window_bounds = array<i64: 8, 1>}, {pipeline_mode = #tpu.pipeline_mode<synchronous>, transform_indices = @transform_5, window_bounds = array<i64: 8, 24>}, {pipeline_mode = #tpu.pipeline_mode<synchronous>, transform_indices = @transform_6, window_bounds = array<i64: 8, 1>}, {pipeline_mode = #tpu.pipeline_mode<synchronous>, transform_indices = @transform_7, window_bounds = array<i64: 8, 24>}, {pipeline_mode = #tpu.pipeline_mode<synchronous>, transform_indices = @transform_8, window_bounds = array<i64: 8, 1>}, {transform_indices = @transform_9, window_bounds = array<i64: 1, 8, 128>}]} {
    %c0 = arith.constant 0 : index
    %c0_0 = arith.constant 0 : index
    %c0_1 = arith.constant 0 : index
    %c0_2 = arith.constant 0 : index
    %0 = vector.load %arg2[%c0, %c0_0, %c0_1, %c0_2] : memref<1x1x8x140xf32, #tpu.memory_space<vmem>>, vector<1x1x8x140xf32>
    %1 = vector.shape_cast %0 : vector<1x1x8x140xf32> to vector<8x140xf32>
    %2 = tpu.iota {dimensions = array<i32: 1>} : vector<1x140xi32>
    %c128_i32 = arith.constant 128 : i32
    %3 = arith.muli %arg1, %c128_i32 : i32
    %c6_i32 = arith.constant 6 : i32
    %4 = arith.subi %3, %c6_i32 : i32
    %5 = vector.broadcast %4 : i32 to vector<1x140xi32>
    %6 = arith.addi %2, %5 : vector<1x140xi32>
    %c0_i32 = arith.constant 0 : i32
    %7 = vector.broadcast %c0_i32 : i32 to vector<1x140xi32>
    %8 = arith.cmpi sge, %6, %7 : vector<1x140xi32>
    %c128_i32_3 = arith.constant 128 : i32
    %9 = vector.broadcast %c128_i32_3 : i32 to vector<1x140xi32>
    %10 = arith.cmpi slt, %6, %9 : vector<1x140xi32>
    %11 = arith.andi %8, %10 : vector<1x140xi1>
    %12 = arith.extui %11 : vector<1x140xi1> to vector<1x140xi32>
    %13 = arith.sitofp %12 : vector<1x140xi32> to vector<1x140xf32>
    %cst = arith.constant 0.000000e+00 : f32
    %14 = vector.broadcast %cst : f32 to vector<8x140xf32>
    %15 = arith.cmpf oge, %1, %14 : vector<8x140xf32>
    %cst_4 = arith.constant 1.000000e-01 : f32
    %16 = vector.broadcast %cst_4 : f32 to vector<8x140xf32>
    %17 = arith.mulf %16, %1 : vector<8x140xf32>
    %18 = arith.select %15, %1, %17 : vector<8x140xi1>, vector<8x140xf32>
    %19 = arith.truncf %18 : vector<8x140xf32> to vector<8x140xbf16>
    %cst_5 = arith.constant 0.000000e+00 : bf16
    %20 = vector.broadcast %cst_5 : bf16 to vector<8x1xbf16>
    %21 = tpu.concatenate %20, %19, %20 in 1 : vector<8x1xbf16>, vector<8x140xbf16>, vector<8x1xbf16> -> vector<8x142xbf16>
    %22 = vector.extract_strided_slice %21 {offsets = [0, 0], sizes = [8, 140], strides = [1, 1]} : vector<8x142xbf16> to vector<8x140xbf16>
    %23 = vector.extract_strided_slice %21 {offsets = [0, 1], sizes = [8, 140], strides = [1, 1]} : vector<8x142xbf16> to vector<8x140xbf16>
    %24 = vector.extract_strided_slice %21 {offsets = [0, 2], sizes = [8, 140], strides = [1, 1]} : vector<8x142xbf16> to vector<8x140xbf16>
    %25 = tpu.concatenate %22, %23, %24 in 0 : vector<8x140xbf16>, vector<8x140xbf16>, vector<8x140xbf16> -> vector<24x140xbf16>
    %c0_6 = arith.constant 0 : index
    %c0_7 = arith.constant 0 : index
    %26 = vector.load %arg3[%c0_6, %c0_7] : memref<8x24xbf16, #tpu.memory_space<vmem>>, vector<8x24xbf16>
    %cst_8 = arith.constant dense<0.000000e+00> : vector<8x140xf32>
    %27 = tpu.matmul %26, %25, %cst_8 {dimension_numbers = #tpu.dot_dimension_numbers<[1], [0], [0], [1], [0, 0, 1, 1], [], []>} : vector<8x24xbf16>, vector<24x140xbf16>, vector<8x140xf32> -> vector<8x140xf32>
    %c0_9 = arith.constant 0 : index
    %c0_10 = arith.constant 0 : index
    %28 = vector.load %arg4[%c0_9, %c0_10] : memref<8x1xf32, #tpu.memory_space<vmem>>, vector<8x1xf32>
    %29 = vector.broadcast %28 : vector<8x1xf32> to vector<8x140xf32>
    %30 = arith.addf %27, %29 : vector<8x140xf32>
    %31 = vector.broadcast %13 : vector<1x140xf32> to vector<8x140xf32>
    %32 = arith.mulf %30, %31 : vector<8x140xf32>
    %cst_11 = arith.constant 0.000000e+00 : f32
    %33 = vector.broadcast %cst_11 : f32 to vector<8x140xf32>
    %34 = arith.cmpf oge, %32, %33 : vector<8x140xf32>
    %cst_12 = arith.constant 1.000000e-01 : f32
    %35 = vector.broadcast %cst_12 : f32 to vector<8x140xf32>
    %36 = arith.mulf %35, %32 : vector<8x140xf32>
    %37 = arith.select %34, %32, %36 : vector<8x140xi1>, vector<8x140xf32>
    %38 = arith.truncf %37 : vector<8x140xf32> to vector<8x140xbf16>
    %cst_13 = arith.constant 0.000000e+00 : bf16
    %39 = vector.broadcast %cst_13 : bf16 to vector<8x1xbf16>
    %40 = tpu.concatenate %39, %38, %39 in 1 : vector<8x1xbf16>, vector<8x140xbf16>, vector<8x1xbf16> -> vector<8x142xbf16>
    %41 = vector.extract_strided_slice %40 {offsets = [0, 0], sizes = [8, 140], strides = [1, 1]} : vector<8x142xbf16> to vector<8x140xbf16>
    %42 = vector.extract_strided_slice %40 {offsets = [0, 1], sizes = [8, 140], strides = [1, 1]} : vector<8x142xbf16> to vector<8x140xbf16>
    %43 = vector.extract_strided_slice %40 {offsets = [0, 2], sizes = [8, 140], strides = [1, 1]} : vector<8x142xbf16> to vector<8x140xbf16>
    %44 = tpu.concatenate %41, %42, %43 in 0 : vector<8x140xbf16>, vector<8x140xbf16>, vector<8x140xbf16> -> vector<24x140xbf16>
    %c0_14 = arith.constant 0 : index
    %c0_15 = arith.constant 0 : index
    %45 = vector.load %arg5[%c0_14, %c0_15] : memref<8x24xbf16, #tpu.memory_space<vmem>>, vector<8x24xbf16>
    %cst_16 = arith.constant dense<0.000000e+00> : vector<8x140xf32>
    %46 = tpu.matmul %45, %44, %cst_16 {dimension_numbers = #tpu.dot_dimension_numbers<[1], [0], [0], [1], [0, 0, 1, 1], [], []>} : vector<8x24xbf16>, vector<24x140xbf16>, vector<8x140xf32> -> vector<8x140xf32>
    %c0_17 = arith.constant 0 : index
    %c0_18 = arith.constant 0 : index
    %47 = vector.load %arg6[%c0_17, %c0_18] : memref<8x1xf32, #tpu.memory_space<vmem>>, vector<8x1xf32>
    %48 = vector.broadcast %47 : vector<8x1xf32> to vector<8x140xf32>
    %49 = arith.addf %46, %48 : vector<8x140xf32>
    %50 = vector.broadcast %13 : vector<1x140xf32> to vector<8x140xf32>
    %51 = arith.mulf %49, %50 : vector<8x140xf32>
    %52 = arith.addf %1, %51 : vector<8x140xf32>
    %cst_19 = arith.constant 0.000000e+00 : f32
    %53 = vector.broadcast %cst_19 : f32 to vector<8x140xf32>
    %54 = arith.cmpf oge, %52, %53 : vector<8x140xf32>
    %cst_20 = arith.constant 1.000000e-01 : f32
    %55 = vector.broadcast %cst_20 : f32 to vector<8x140xf32>
    %56 = arith.mulf %55, %52 : vector<8x140xf32>
    %57 = arith.select %54, %52, %56 : vector<8x140xi1>, vector<8x140xf32>
    %58 = arith.truncf %57 : vector<8x140xf32> to vector<8x140xbf16>
    %cst_21 = arith.constant 0.000000e+00 : bf16
    %59 = vector.broadcast %cst_21 : bf16 to vector<8x3xbf16>
    %60 = tpu.concatenate %59, %58, %59 in 1 : vector<8x3xbf16>, vector<8x140xbf16>, vector<8x3xbf16> -> vector<8x146xbf16>
    %61 = vector.extract_strided_slice %60 {offsets = [0, 0], sizes = [8, 140], strides = [1, 1]} : vector<8x146xbf16> to vector<8x140xbf16>
    %62 = vector.extract_strided_slice %60 {offsets = [0, 3], sizes = [8, 140], strides = [1, 1]} : vector<8x146xbf16> to vector<8x140xbf16>
    %63 = vector.extract_strided_slice %60 {offsets = [0, 6], sizes = [8, 140], strides = [1, 1]} : vector<8x146xbf16> to vector<8x140xbf16>
    %64 = tpu.concatenate %61, %62, %63 in 0 : vector<8x140xbf16>, vector<8x140xbf16>, vector<8x140xbf16> -> vector<24x140xbf16>
    %c0_22 = arith.constant 0 : index
    %c0_23 = arith.constant 0 : index
    %65 = vector.load %arg7[%c0_22, %c0_23] : memref<8x24xbf16, #tpu.memory_space<vmem>>, vector<8x24xbf16>
    %cst_24 = arith.constant dense<0.000000e+00> : vector<8x140xf32>
    %66 = tpu.matmul %65, %64, %cst_24 {dimension_numbers = #tpu.dot_dimension_numbers<[1], [0], [0], [1], [0, 0, 1, 1], [], []>} : vector<8x24xbf16>, vector<24x140xbf16>, vector<8x140xf32> -> vector<8x140xf32>
    %c0_25 = arith.constant 0 : index
    %c0_26 = arith.constant 0 : index
    %67 = vector.load %arg8[%c0_25, %c0_26] : memref<8x1xf32, #tpu.memory_space<vmem>>, vector<8x1xf32>
    %68 = vector.broadcast %67 : vector<8x1xf32> to vector<8x140xf32>
    %69 = arith.addf %66, %68 : vector<8x140xf32>
    %70 = vector.broadcast %13 : vector<1x140xf32> to vector<8x140xf32>
    %71 = arith.mulf %69, %70 : vector<8x140xf32>
    %cst_27 = arith.constant 0.000000e+00 : f32
    %72 = vector.broadcast %cst_27 : f32 to vector<8x140xf32>
    %73 = arith.cmpf oge, %71, %72 : vector<8x140xf32>
    %cst_28 = arith.constant 1.000000e-01 : f32
    %74 = vector.broadcast %cst_28 : f32 to vector<8x140xf32>
    %75 = arith.mulf %74, %71 : vector<8x140xf32>
    %76 = arith.select %73, %71, %75 : vector<8x140xi1>, vector<8x140xf32>
    %77 = arith.truncf %76 : vector<8x140xf32> to vector<8x140xbf16>
    %cst_29 = arith.constant 0.000000e+00 : bf16
    %78 = vector.broadcast %cst_29 : bf16 to vector<8x1xbf16>
    %79 = tpu.concatenate %78, %77, %78 in 1 : vector<8x1xbf16>, vector<8x140xbf16>, vector<8x1xbf16> -> vector<8x142xbf16>
    %80 = vector.extract_strided_slice %79 {offsets = [0, 0], sizes = [8, 140], strides = [1, 1]} : vector<8x142xbf16> to vector<8x140xbf16>
    %81 = vector.extract_strided_slice %79 {offsets = [0, 1], sizes = [8, 140], strides = [1, 1]} : vector<8x142xbf16> to vector<8x140xbf16>
    %82 = vector.extract_strided_slice %79 {offsets = [0, 2], sizes = [8, 140], strides = [1, 1]} : vector<8x142xbf16> to vector<8x140xbf16>
    %83 = tpu.concatenate %80, %81, %82 in 0 : vector<8x140xbf16>, vector<8x140xbf16>, vector<8x140xbf16> -> vector<24x140xbf16>
    %c0_30 = arith.constant 0 : index
    %c0_31 = arith.constant 0 : index
    %84 = vector.load %arg9[%c0_30, %c0_31] : memref<8x24xbf16, #tpu.memory_space<vmem>>, vector<8x24xbf16>
    %cst_32 = arith.constant dense<0.000000e+00> : vector<8x140xf32>
    %85 = tpu.matmul %84, %83, %cst_32 {dimension_numbers = #tpu.dot_dimension_numbers<[1], [0], [0], [1], [0, 0, 1, 1], [], []>} : vector<8x24xbf16>, vector<24x140xbf16>, vector<8x140xf32> -> vector<8x140xf32>
    %c0_33 = arith.constant 0 : index
    %c0_34 = arith.constant 0 : index
    %86 = vector.load %arg10[%c0_33, %c0_34] : memref<8x1xf32, #tpu.memory_space<vmem>>, vector<8x1xf32>
    %87 = vector.broadcast %86 : vector<8x1xf32> to vector<8x140xf32>
    %88 = arith.addf %85, %87 : vector<8x140xf32>
    %89 = arith.addf %52, %88 : vector<8x140xf32>
    %90 = vector.extract_strided_slice %89 {offsets = [0, 6], sizes = [8, 128], strides = [1, 1]} : vector<8x140xf32> to vector<8x128xf32>
    %c0_35 = arith.constant 0 : index
    %c0_36 = arith.constant 0 : index
    %c0_37 = arith.constant 0 : index
    %91 = vector.load %arg11[%c0_35, %c0_36, %c0_37] : memref<1x8x128xf32, #tpu.memory_space<vmem>>, vector<1x8x128xf32>
    %92 = vector.shape_cast %91 : vector<1x8x128xf32> to vector<8x128xf32>
    %93 = vector.shape_cast %90 : vector<8x128xf32> to vector<1x8x128xf32>
    tpu.vector_store %arg11[%c0_35, %c0_36, %c0_37], %93 {strides = array<i32>} : memref<1x8x128xf32, #tpu.memory_space<vmem>>, vector<1x8x128xf32>,
    return
  }
  func.func @transform_0(%arg0: i32, %arg1: i32) -> (i32, i32, i32, i32) {
    %c0_i32 = arith.constant 0 : i32
    %c0_i32_0 = arith.constant 0 : i32
    %c0_i32_1 = arith.constant 0 : i32
    return %arg0, %arg1, %c0_i32, %c0_i32_0 : i32, i32, i32, i32
  }
  func.func @transform_1(%arg0: i32, %arg1: i32) -> (i32, i32) {
    %c0_i32 = arith.constant 0 : i32
    %c0_i32_0 = arith.constant 0 : i32
    %c0_i32_1 = arith.constant 0 : i32
    return %c0_i32, %c0_i32_0 : i32, i32
  }
  func.func @transform_2(%arg0: i32, %arg1: i32) -> (i32, i32) {
    %c0_i32 = arith.constant 0 : i32
    %c0_i32_0 = arith.constant 0 : i32
    %c0_i32_1 = arith.constant 0 : i32
    return %c0_i32, %c0_i32_0 : i32, i32
  }
  func.func @transform_3(%arg0: i32, %arg1: i32) -> (i32, i32) {
    %c0_i32 = arith.constant 0 : i32
    %c0_i32_0 = arith.constant 0 : i32
    %c0_i32_1 = arith.constant 0 : i32
    return %c0_i32, %c0_i32_0 : i32, i32
  }
  func.func @transform_4(%arg0: i32, %arg1: i32) -> (i32, i32) {
    %c0_i32 = arith.constant 0 : i32
    %c0_i32_0 = arith.constant 0 : i32
    %c0_i32_1 = arith.constant 0 : i32
    return %c0_i32, %c0_i32_0 : i32, i32
  }
  func.func @transform_5(%arg0: i32, %arg1: i32) -> (i32, i32) {
    %c0_i32 = arith.constant 0 : i32
    %c0_i32_0 = arith.constant 0 : i32
    %c0_i32_1 = arith.constant 0 : i32
    return %c0_i32, %c0_i32_0 : i32, i32
  }
  func.func @transform_6(%arg0: i32, %arg1: i32) -> (i32, i32) {
    %c0_i32 = arith.constant 0 : i32
    %c0_i32_0 = arith.constant 0 : i32
    %c0_i32_1 = arith.constant 0 : i32
    return %c0_i32, %c0_i32_0 : i32, i32
  }
  func.func @transform_7(%arg0: i32, %arg1: i32) -> (i32, i32) {
    %c0_i32 = arith.constant 0 : i32
    %c0_i32_0 = arith.constant 0 : i32
    %c0_i32_1 = arith.constant 0 : i32
    return %c0_i32, %c0_i32_0 : i32, i32
  }
  func.func @transform_8(%arg0: i32, %arg1: i32) -> (i32, i32) {
    %c0_i32 = arith.constant 0 : i32
    %c0_i32_0 = arith.constant 0 : i32
    %c0_i32_1 = arith.constant 0 : i32
    return %c0_i32, %c0_i32_0 : i32, i32
  }
  func.func @transform_9(%arg0: i32, %arg1: i32) -> (i32, i32, i32) {
    %c0_i32 = arith.constant 0 : i32
    %c0_i32_0 = arith.constant 0 : i32
    return %arg0, %c0_i32, %arg1 : i32, i32, i32
  }
}

</mosaic_0001>

<llo_original>
// kernel: tpu_custom_call.1
$region0: #{tpu_custom_call.1}
  #allocation0 [shape = 'u32[]', space=smem, size = 0x4, offset = 0x4, fixed_abs, tag = 'smem constant byte address 0x4 - core index']
  #allocation1 [shape = 'u32[72,128]{1,0:T(1,128)}', space=vmem, size = 0x9000, scoped, tag = 'internal scratch']
  %s0 = inlined_call_operand.hbm [shape: f32[2,1,8,140], index: 0, kind: input, shape index: {}]
  %s1 = inlined_call_operand.vmem [shape: bf16[8,24], index: 1, kind: input, shape index: {}]
  %s2 = inlined_call_operand.vmem [shape: f32[8,1], index: 2, kind: input, shape index: {}]
  %s3 = inlined_call_operand.vmem [shape: bf16[8,24], index: 3, kind: input, shape index: {}]
  %s4 = inlined_call_operand.vmem [shape: f32[8,1], index: 4, kind: input, shape index: {}]
  %s5 = inlined_call_operand.vmem [shape: bf16[8,24], index: 5, kind: input, shape index: {}]
  %s6 = inlined_call_operand.vmem [shape: f32[8,1], index: 6, kind: input, shape index: {}]
  %s7 = inlined_call_operand.vmem [shape: bf16[8,24], index: 7, kind: input, shape index: {}]
  %s8 = inlined_call_operand.vmem [shape: f32[8,1], index: 8, kind: input, shape index: {}]
  %s9 = inlined_call_operand.hbm [shape: f32[2,8,128], index: 9, kind: output, shape index: {}]
  %s10 = sld [smem:[#allocation0]]
  $region73: #{tpu_custom_call.1} parent=0
    _
  %s12 = ssub.s32 1, %s10
  %s13 = scalar_select 0, %s12, %s10
  $region1: #{tpu_custom_call.1} parent=0
    #allocation2 [shape = 'u8[16384]{0}', space=vmem, size = 0x4000, scoped, tag = 'input window, operand 0']
    #allocation3 [shape = 's32[2]{0}', space=sflag, size = 0x8, scoped, tag = 'scoped memory for tpu_custom_call.1']
    #allocation4 [shape = 's32[2]{0}', space=sflag, size = 0x8, scoped, tag = 'scoped memory for tpu_custom_call.1']
    #allocation5 [shape = 'u8[8192]{0}', space=vmem, size = 0x2000, scoped, tag = 'output window, operand 0']
    %14 = vsyncpa [#allocation3], 0
    %s15 = scalar_lea.sflag [#allocation3], 1
    %16 = vsyncpa %s15, 0
    %17 = vsyncpa [#allocation4], 0
    %s18 = scalar_lea.sflag [#allocation4], 1
    %19 = vsyncpa %s18, 0
    loop: start=0, step=1, limit=4
    $region2: #{tpu_custom_call.1} parent=1 // loop_pre_header
      _
    $region3: #{tpu_custom_call.1} parent=1 // loop_header
      %s21 = sphi 0, %s25
      %p22 = scmp.ge.s32.totalorder %s21, 4
      %s28 = sphi 0, %s40
      %s29 = sphi 0, %s36
      %s30 = sphi 0, %s28
      %s31 = sphi 0, %s29
      %s32 = sphi 0, %s30
      %s33 = sphi 0, %s31
      %s45 = sphi 0, %s47
      %s48 = sphi 0, %s45
      %s49 = sphi 0, %s48
      %s65 = sphi 0, %s49
      %s69 = sphi 0, %s69
      %s71 = sphi 0, %s69
      %s72 = sphi 0, %s71
      %s86 = sphi 0, %s72
      %s90 = sphi 0, %s90
      %s92 = sphi 0, %s90
      %s93 = sphi 0, %s92
      %s107 = sphi 0, %s93
      %s111 = sphi 0, %s111
      %s113 = sphi 0, %s111
      %s114 = sphi 0, %s113
      %s128 = sphi 0, %s114
      %s132 = sphi 0, %s132
      %s134 = sphi 0, %s132
      %s135 = sphi 0, %s134
      %s149 = sphi 0, %s135
      %s153 = sphi 0, %s153
      %s155 = sphi 0, %s153
      %s156 = sphi 0, %s155
      %s170 = sphi 0, %s156
      %s174 = sphi 0, %s174
      %s176 = sphi 0, %s174
      %s177 = sphi 0, %s176
      %s191 = sphi 0, %s177
      %s195 = sphi 0, %s195
      %s197 = sphi 0, %s195
      %s198 = sphi 0, %s197
      %s212 = sphi 0, %s198
      %s216 = sphi 0, %s216
      %s218 = sphi 0, %s216
      %s219 = sphi 0, %s218
      %s233 = sphi 0, %s219
      %s241 = sphi 0, %s243
      %s244 = sphi 0, %s241
      %s245 = sphi 0, %s244
      %s261 = sphi 0, %s245
    $region4: #{tpu_custom_call.1} parent=1 // loop_header_branch
      %24 = sbr.rel (%p22) target = $region8
    $region5: #{tpu_custom_call.1} parent=1 // loop_body
      %s26 = ssub.s32 %s21, 1
      %s27 = ssub.s32 %s21, 2
      %s34 = sadd.s32 1, %s29
      %p35 = scmp.ge.s32.totalorder %s34, 1
      %s36 = scalar_select %p35, 0, %s34
      %s37 = sadd.s32 1, %s28
      %s38 = scalar_select %p35, %s37, %s28
      %p39 = scmp.ge.s32.totalorder %s38, 2
      %s40 = scalar_select %p39, 0, %s38
      %s41 = ssub.s32 %s28, %s40
      %s42 = ssub.s32 %s29, %s36
      %s43 = sor.u32 %s41, %s42
      %p44 = scmp.eq.s32.totalorder %s43, 0
      %s46 = sadd.s32 %s45, 1
      %s47 = scalar_select %p44, %s45, %s46
      %p50 = pneg %p44
      %p51 = scmp.eq.s32.totalorder %s21, 1
      %p52 = por %p50, %p51
      %p53 = scmp.ne.s32.totalorder %s45, %s48
      %p54 = scmp.eq.s32.totalorder %s21, 0
      %p55 = por %p53, %p54
      %p56 = scmp.ne.s32.totalorder %s45, %s48
      %p57 = scmp.eq.s32.totalorder %s26, 1
      %p58 = por %p56, %p57
      %p59 = scmp.ne.s32.totalorder %s48, %s49
      %p60 = scmp.eq.s32.totalorder %s26, 0
      %p61 = por %p59, %p60
      %p62 = scmp.ne.s32.totalorder %s48, %s49
      %p63 = scmp.eq.s32.totalorder %s27, 1
      %p64 = por %p62, %p63
      %p66 = scmp.ne.s32.totalorder %s49, %s65
      %p67 = scmp.eq.s32.totalorder %s27, 0
      %p68 = por %p66, %p67
      %s70 = sadd.s32 %s69, 1
      %p73 = scmp.eq.s32.totalorder %s21, 1
      %p74 = scmp.ne.s32.totalorder %s69, %s71
      %p75 = scmp.eq.s32.totalorder %s21, 0
      %p76 = por %p74, %p75
      %p77 = scmp.ne.s32.totalorder %s69, %s71
      %p78 = scmp.eq.s32.totalorder %s26, 1
      %p79 = por %p77, %p78
      %p80 = scmp.ne.s32.totalorder %s71, %s72
      %p81 = scmp.eq.s32.totalorder %s26, 0
      %p82 = por %p80, %p81
      %p83 = scmp.ne.s32.totalorder %s71, %s72
      %p84 = scmp.eq.s32.totalorder %s27, 1
      %p85 = por %p83, %p84
      %p87 = scmp.ne.s32.totalorder %s72, %s86
      %p88 = scmp.eq.s32.totalorder %s27, 0
      %p89 = por %p87, %p88
      %s91 = sadd.s32 %s90, 1
      %p94 = scmp.eq.s32.totalorder %s21, 1
      %p95 = scmp.ne.s32.totalorder %s90, %s92
      %p96 = scmp.eq.s32.totalorder %s21, 0
      %p97 = por %p95, %p96
      %p98 = scmp.ne.s32.totalorder %s90, %s92
      %p99 = scmp.eq.s32.totalorder %s26, 1
      %p100 = por %p98, %p99
      %p101 = scmp.ne.s32.totalorder %s92, %s93
      %p102 = scmp.eq.s32.totalorder %s26, 0
      %p103 = por %p101, %p102
      %p104 = scmp.ne.s32.totalorder %s92, %s93
      %p105 = scmp.eq.s32.totalorder %s27, 1
      %p106 = por %p104, %p105
      %p108 = scmp.ne.s32.totalorder %s93, %s107
      %p109 = scmp.eq.s32.totalorder %s27, 0
      %p110 = por %p108, %p109
      %s112 = sadd.s32 %s111, 1
      %p115 = scmp.eq.s32.totalorder %s21, 1
      %p116 = scmp.ne.s32.totalorder %s111, %s113
      %p117 = scmp.eq.s32.totalorder %s21, 0
      %p118 = por %p116, %p117
      %p119 = scmp.ne.s32.totalorder %s111, %s113
      %p120 = scmp.eq.s32.totalorder %s26, 1
      %p121 = por %p119, %p120
      %p122 = scmp.ne.s32.totalorder %s113, %s114
      %p123 = scmp.eq.s32.totalorder %s26, 0
      %p124 = por %p122, %p123
      %p125 = scmp.ne.s32.totalorder %s113, %s114
      %p126 = scmp.eq.s32.totalorder %s27, 1
      %p127 = por %p125, %p126
      %p129 = scmp.ne.s32.totalorder %s114, %s128
      %p130 = scmp.eq.s32.totalorder %s27, 0
      %p131 = por %p129, %p130
      %s133 = sadd.s32 %s132, 1
      %p136 = scmp.eq.s32.totalorder %s21, 1
      %p137 = scmp.ne.s32.totalorder %s132, %s134
      %p138 = scmp.eq.s32.totalorder %s21, 0
      %p139 = por %p137, %p138
      %p140 = scmp.ne.s32.totalorder %s132, %s134
      %p141 = scmp.eq.s32.totalorder %s26, 1
      %p142 = por %p140, %p141
      %p143 = scmp.ne.s32.totalorder %s134, %s135
      %p144 = scmp.eq.s32.totalorder %s26, 0
      %p145 = por %p143, %p144
      %p146 = scmp.ne.s32.totalorder %s134, %s135
      %p147 = scmp.eq.s32.totalorder %s27, 1
      %p148 = por %p146, %p147
      %p150 = scmp.ne.s32.totalorder %s135, %s149
      %p151 = scmp.eq.s32.totalorder %s27, 0
      %p152 = por %p150, %p151
      %s154 = sadd.s32 %s153, 1
      %p157 = scmp.eq.s32.totalorder %s21, 1
      %p158 = scmp.ne.s32.totalorder %s153, %s155
      %p159 = scmp.eq.s32.totalorder %s21, 0
      %p160 = por %p158, %p159
      %p161 = scmp.ne.s32.totalorder %s153, %s155
      %p162 = scmp.eq.s32.totalorder %s26, 1
      %p163 = por %p161, %p162
      %p164 = scmp.ne.s32.totalorder %s155, %s156
      %p165 = scmp.eq.s32.totalorder %s26, 0
      %p166 = por %p164, %p165
      %p167 = scmp.ne.s32.totalorder %s155, %s156
      %p168 = scmp.eq.s32.totalorder %s27, 1
      %p169 = por %p167, %p168
      %p171 = scmp.ne.s32.totalorder %s156, %s170
      %p172 = scmp.eq.s32.totalorder %s27, 0
      %p173 = por %p171, %p172
      %s175 = sadd.s32 %s174, 1
      %p178 = scmp.eq.s32.totalorder %s21, 1
      %p179 = scmp.ne.s32.totalorder %s174, %s176
      %p180 = scmp.eq.s32.totalorder %s21, 0
      %p181 = por %p179, %p180
      %p182 = scmp.ne.s32.totalorder %s174, %s176
      %p183 = scmp.eq.s32.totalorder %s26, 1
      %p184 = por %p182, %p183
      %p185 = scmp.ne.s32.totalorder %s176, %s177
      %p186 = scmp.eq.s32.totalorder %s26, 0
      %p187 = por %p185, %p186
      %p188 = scmp.ne.s32.totalorder %s176, %s177
      %p189 = scmp.eq.s32.totalorder %s27, 1
      %p190 = por %p188, %p189
      %p192 = scmp.ne.s32.totalorder %s177, %s191
      %p193 = scmp.eq.s32.totalorder %s27, 0
      %p194 = por %p192, %p193
      %s196 = sadd.s32 %s195, 1
      %p199 = scmp.eq.s32.totalorder %s21, 1
      %p200 = scmp.ne.s32.totalorder %s195, %s197
      %p201 = scmp.eq.s32.totalorder %s21, 0
      %p202 = por %p200, %p201
      %p203 = scmp.ne.s32.totalorder %s195, %s197
      %p204 = scmp.eq.s32.totalorder %s26, 1
      %p205 = por %p203, %p204
      %p206 = scmp.ne.s32.totalorder %s197, %s198
      %p207 = scmp.eq.s32.totalorder %s26, 0
      %p208 = por %p206, %p207
      %p209 = scmp.ne.s32.totalorder %s197, %s198
      %p210 = scmp.eq.s32.totalorder %s27, 1
      %p211 = por %p209, %p210
      %p213 = scmp.ne.s32.totalorder %s198, %s212
      %p214 = scmp.eq.s32.totalorder %s27, 0
      %p215 = por %p213, %p214
      %s217 = sadd.s32 %s216, 1
      %p220 = scmp.eq.s32.totalorder %s21, 1
      %p221 = scmp.ne.s32.totalorder %s216, %s218
      %p222 = scmp.eq.s32.totalorder %s21, 0
      %p223 = por %p221, %p222
      %p224 = scmp.ne.s32.totalorder %s216, %s218
      %p225 = scmp.eq.s32.totalorder %s26, 1
      %p226 = por %p224, %p225
      %p227 = scmp.ne.s32.totalorder %s218, %s219
      %p228 = scmp.eq.s32.totalorder %s26, 0
      %p229 = por %p227, %p228
      %p230 = scmp.ne.s32.totalorder %s218, %s219
      %p231 = scmp.eq.s32.totalorder %s27, 1
      %p232 = por %p230, %p231
      %p234 = scmp.ne.s32.totalorder %s219, %s233
      %p235 = scmp.eq.s32.totalorder %s27, 0
      %p236 = por %p234, %p235
      %s237 = ssub.s32 %s28, %s40
      %s238 = ssub.s32 %s29, %s36
      %s239 = sor.u32 %s237, %s238
      %p240 = scmp.eq.s32.totalorder %s239, 0
      %s242 = sadd.s32 %s241, 1
      %s243 = scalar_select %p240, %s241, %s242
      %p246 = pneg %p240
      %p247 = scmp.eq.s32.totalorder %s21, 1
      %p248 = por %p246, %p247
      %p249 = scmp.ne.s32.totalorder %s241, %s244
      %p250 = scmp.eq.s32.totalorder %s21, 0
      %p251 = por %p249, %p250
      %p252 = scmp.ne.s32.totalorder %s241, %s244
      %p253 = scmp.eq.s32.totalorder %s26, 1
      %p254 = por %p252, %p253
      %p255 = scmp.ne.s32.totalorder %s244, %s245
      %p256 = scmp.eq.s32.totalorder %s26, 0
      %p257 = por %p255, %p256
      %p258 = scmp.ne.s32.totalorder %s244, %s245
      %p259 = scmp.eq.s32.totalorder %s27, 1
      %p260 = por %p258, %p259
      %p262 = scmp.ne.s32.totalorder %s245, %s261
      %p263 = scmp.eq.s32.totalorder %s27, 0
      %p264 = por %p262, %p263
      %p265 = scmp.le.s32.totalorder 1, %s21
      %p266 = scmp.lt.s32.totalorder %s21, 3
      %p267 = pnand %p265, %p266
      %p268 = pneg %p267
      // Predicated region
      $region9: #{tpu_custom_call.1} parent=5 // pred_check
        _
      $region10: #{tpu_custom_call.1} parent=5 // pred_check_branch
        %270 = sbr.rel (%p267) target = $region12
      $region11: #{tpu_custom_call.1} parent=5 // pred_region
        %s271 = ssub.s32 %s21, 1
        // Predicated region
        $region13: #{tpu_custom_call.1} parent=11 // pred_check
          %p272 = pneg %p82
        $region14: #{tpu_custom_call.1} parent=11 // pred_check_branch
          %274 = sbr.rel (%p272) target = $region16
        $region15: #{tpu_custom_call.1} parent=11 // pred_region
          _
        $region16: #{tpu_custom_call.1} parent=11 // pred_fallthru
          _
        // Predicated region
        $region17: #{tpu_custom_call.1} parent=11 // pred_check
          %p275 = pneg %p103
        $region18: #{tpu_custom_call.1} parent=11 // pred_check_branch
          %277 = sbr.rel (%p275) target = $region20
        $region19: #{tpu_custom_call.1} parent=11 // pred_region
          _
        $region20: #{tpu_custom_call.1} parent=11 // pred_fallthru
          _
        // Predicated region
        $region21: #{tpu_custom_call.1} parent=11 // pred_check
          %p278 = pneg %p124
        $region22: #{tpu_custom_call.1} parent=11 // pred_check_branch
          %280 = sbr.rel (%p278) target = $region24
        $region23: #{tpu_custom_call.1} parent=11 // pred_region
          _
        $region24: #{tpu_custom_call.1} parent=11 // pred_fallthru
          _
        // Predicated region
        $region25: #{tpu_custom_call.1} parent=11 // pred_check
          %p281 = pneg %p145
        $region26: #{tpu_custom_call.1} parent=11 // pred_check_branch
          %283 = sbr.rel (%p281) target = $region28
        $region27: #{tpu_custom_call.1} parent=11 // pred_region
          _
        $region28: #{tpu_custom_call.1} parent=11 // pred_fallthru
          _
        // Predicated region
        $region29: #{tpu_custom_call.1} parent=11 // pred_check
          %p284 = pneg %p166
        $region30: #{tpu_custom_call.1} parent=11 // pred_check_branch
          %286 = sbr.rel (%p284) target = $region32
        $region31: #{tpu_custom_call.1} parent=11 // pred_region
          _
        $region32: #{tpu_custom_call.1} parent=11 // pred_fallthru
          _
        // Predicated region
        $region33: #{tpu_custom_call.1} parent=11 // pred_check
          %p287 = pneg %p187
        $region34: #{tpu_custom_call.1} parent=11 // pred_check_branch
          %289 = sbr.rel (%p287) target = $region36
        $region35: #{tpu_custom_call.1} parent=11 // pred_region
          _
        $region36: #{tpu_custom_call.1} parent=11 // pred_fallthru
          _
        // Predicated region
        $region37: #{tpu_custom_call.1} parent=11 // pred_check
          %p290 = pneg %p208
        $region38: #{tpu_custom_call.1} parent=11 // pred_check_branch
          %292 = sbr.rel (%p290) target = $region40
        $region39: #{tpu_custom_call.1} parent=11 // pred_region
          _
        $region40: #{tpu_custom_call.1} parent=11 // pred_fallthru
          _
        // Predicated region
        $region41: #{tpu_custom_call.1} parent=11 // pred_check
          %p293 = pneg %p229
        $region42: #{tpu_custom_call.1} parent=11 // pred_check_branch
          %295 = sbr.rel (%p293) target = $region44
        $region43: #{tpu_custom_call.1} parent=11 // pred_region
          _
        $region44: #{tpu_custom_call.1} parent=11 // pred_fallthru
          _
      $region12: #{tpu_custom_call.1} parent=5 // pred_fallthru
        _
      %p296 = scmp.lt.s32.totalorder %s21, 2
      // Predicated region
      $region45: #{tpu_custom_call.1} parent=5 // pred_check
        %p297 = pneg %p296
      $region46: #{tpu_custom_call.1} parent=5 // pred_check_branch
        %299 = sbr.rel (%p297) target = $region48
      $region47: #{tpu_custom_call.1} parent=5 // pred_region
        // Predicated region
        $region49: #{tpu_custom_call.1} parent=47 // pred_check
          %p300 = pneg %p55
        $region50: #{tpu_custom_call.1} parent=47 // pred_check_branch
          %302 = sbr.rel (%p300) target = $region52
        $region51: #{tpu_custom_call.1} parent=47 // pred_region
          %s303 = sand.u32 %s45, 1
          %s304 = scalar_lea.sflag [#allocation3], %s303
          %s305 = sand.u32 %s45, 1
          %s306 = smul.addr %s305, 16
          %s307 = scalar_lea.vmem [#allocation2], %s306
          %309 = vsyncadd %s304, 0
          %s310 = smul.addr %s29, 2
          %s311 = smul.addr %s28, 2
          %s312 = sadd.s32 %s310, %s311
          %s313 = smul.addr %s312, 8
          %s314 = scalar_lea.hbm %s0, %s313
          %s316 = sshll.u32 %s314, 4
          %s317 = int_to_ptr.hbm [resolvable:$true] %s316
          %s318 = sshll.u32 %s307, 4
          %s319 = int_to_ptr.vmem [resolvable:$true] %s318
          %321 = dma.hbm_to_vmem [thread:$0]  %s317, 256, %s319, %s304
        $region52: #{tpu_custom_call.1} parent=47 // pred_fallthru
          _
      $region48: #{tpu_custom_call.1} parent=5 // pred_fallthru
        _
      %p322 = scmp.le.s32.totalorder 1, %s21
      %p323 = scmp.lt.s32.totalorder %s21, 3
      %p324 = pnand %p322, %p323
      %p325 = pneg %p324
      // Predicated region
      $region53: #{tpu_custom_call.1} parent=5 // pred_check
        _
      $region54: #{tpu_custom_call.1} parent=5 // pred_check_branch
        %327 = sbr.rel (%p324) target = $region56
      $region55: #{tpu_custom_call.1} parent=5 // pred_region
        %s328 = ssub.s32 %s21, 1
        %s329 = sand.u32 %s48, 1
        %s330 = scalar_lea.sflag [#allocation3], %s329
        %s331 = sand.u32 %s48, 1
        %s332 = smul.addr %s331, 16
        %s333 = scalar_lea.vmem [#allocation2], %s332
        // Predicated region
        $region57: #{tpu_custom_call.1} parent=55 // pred_check
          %p334 = pneg %p61
        $region58: #{tpu_custom_call.1} parent=55 // pred_check_branch
          %336 = sbr.rel (%p334) target = $region60
        $region59: #{tpu_custom_call.1} parent=55 // pred_region
          %338 = dma.done %s330, 256
        $region60: #{tpu_custom_call.1} parent=55 // pred_fallthru
          _
        %s339 = sand.u32 %s48, 1
        %s340 = scalar_lea.sflag [#allocation3], %s339
        %s341 = sand.u32 %s48, 1
        %s342 = smul.addr %s341, 16
        %s343 = scalar_lea.vmem [#allocation2], %s342
        %p344 = pneg %p61
        %p345 = pneg %p58
        %p346 = pneg %p82
        %p347 = pneg %p79
        %p348 = pneg %p103
        %p349 = pneg %p100
        %p350 = pneg %p124
        %p351 = pneg %p121
        %p352 = pneg %p145
        %p353 = pneg %p142
        %p354 = pneg %p166
        %p355 = pneg %p163
        %p356 = pneg %p187
        %p357 = pneg %p184
        %p358 = pneg %p208
        %p359 = pneg %p205
        %p360 = pneg %p229
        %p361 = pneg %p226
        %p362 = pneg %p257
        %p363 = pneg %p254
        %s364 = sand.u32 %s244, 1
        %s365 = scalar_lea.sflag [#allocation4], %s364
        %s366 = sand.u32 %s244, 1
        %s367 = smul.addr %s366, 8
        %s368 = scalar_lea.vmem [#allocation5], %s367
        %v370 = vld [vmem:[%s333] sm:$0xff]
        %v371 = vld [vmem:[%s333 + $0x8] sm:$0xff]
        %v372 = vlaneseq
        %v373 = vand.u32 %v372, 127
        %v374 = vadd.s32 %v373, 128
        %s375 = smul.u32 %s31, 128
        %s376 = ssub.s32 %s375, 6
        %v377 = vstv %s376
        %v378 = vadd.s32 %v373, %v377
        %v379 = vadd.s32 %v374, %v377
        %vm380 = vcmp.ge.s32.totalorder %v378, 0
        %vm381 = vcmp.ge.s32.totalorder %v379, 0
        %vm382 = vcmp.lt.s32.totalorder %v378, 128
        %vm383 = vcmp.lt.s32.totalorder %v379, 128
        %vm384 = vmand %vm380, %vm382
        %vm385 = vmand %vm381, %vm383
        %v386 = vsel %vm384, 1, 0
        %v387 = vsel %vm385, 1, 0
        %v388 = vcvt.s32.f32 %v386
        %v389 = vcvt.s32.f32 %v387
        %vm390 = vcmp.ge.f32.partialorder %v370, 0.0
        %vm391 = vcmp.ge.f32.partialorder %v371, 0.0
        %v392 = vmul.f32 %v370, 0.1
        %v393 = vmul.f32 %v371, 0.1
        %v394 = vsel %vm390, %v370, %v392
        %v395 = vsel %vm391, %v371, %v393
        %v396 = vpack.c.bf16 %v395, %v394
        %v398 = vunpack.c.l.b16 %v396
        %v399 = vunpack.c.h.b16 %v396
        %v400 = vpack.c.b16 %v398, %v398
        %v401 = vpack.c.b16 %v399, %v399
        %402 = vrot.lane.b32.xlu0 %v400, 1
        %v403 = vpop.permute.xlu0 %402
        %404 = vrot.lane.b32.xlu0 %v401, 1
        %v405 = vpop.permute.xlu0 %404
        %vm406 = vcmask 7168
        %v407 = vsel %vm406, %v403, %v405
        %vm408 = vcmask 7168
        %v411 = vsel %vm408, 0, %v403
        %vm412 = vcmask 105472
        %v414 = vsel %vm412, %v407, 0
        %v417 = vrot.slane %v411, 4
        %v418 = vrot.slane %v414, 4
        %419 = vrot.lane.b32.xlu0 %v417, 127
        %v420 = vpop.permute.xlu0 %419
        %421 = vrot.lane.b32.xlu0 %v418, 127
        %v422 = vpop.permute.xlu0 %421
        %vm423 = vcmask 1039360
        %v424 = vsel %vm423, %v420, %v422
        %425 = vrot.lane.b32.xlu0 %v411, 126
        %v426 = vpop.permute.xlu0 %425
        %427 = vrot.lane.b32.xlu0 %v414, 126
        %v428 = vpop.permute.xlu0 %427
        %vm429 = vcmask 1031168
        %v430 = vsel %vm429, %v426, %v428
        %vm431 = vcmask 1043456
        %v433 = vsel %vm431, %v411, %v424
        %v436 = vsel %vm431, %v414, %v422
        %v438 = vld [vmem:[%s1] sm:$0xf]
        %v439 = vld [vmem:[%s2] sm:$0xff]
        %441 = vset.pattern.permute.xlu0 0
        %442 = vperm.xlu0 %441, %v439
        %v443 = vpop.permute.xlu0 %442
        %vm445 = vcmask 195584
        %v447 = vsel %vm445, %v438, 0
        %v450 = vsel %vm431, %v430, 0
        %v453 = vsel %vm431, %v428, 0
        %455 = vmatpush.bf16.msra.mxu0 0
        %456 = vmatpush.bf16.msra.mxu0 0
        %457 = vmatpush.bf16.msra.mxu0 0
        %458 = vmatpush.bf16.msra.mxu0 0
        %459 = vmatpush.bf16.msra.mxu0 0
        %460 = vmatpush.bf16.msra.mxu0 0
        %461 = vmatpush.bf16.msra.mxu0 %v450
        %462 = vmatpush.bf16.msra.mxu0 %v433
        %463 = vmatmul.bf16.gmra.mxu0 %v447
        %v464 = vpop.f32.mrf.mxu0
        %v465 = vadd.f32 %v443, %v464
        %v466 = vpop.f32.mrf.mxu0
        %467 = vdwg.mxu0
        %468 = vmatpush.bf16.msra.mxu0 0
        %469 = vmatpush.bf16.msra.mxu0 0
        %470 = vmatpush.bf16.msra.mxu0 0
        %471 = vmatpush.bf16.msra.mxu0 0
        %472 = vmatpush.bf16.msra.mxu0 0
        %473 = vmatpush.bf16.msra.mxu0 0
        %474 = vmatpush.bf16.msra.mxu0 %v453
        %475 = vmatpush.bf16.msra.mxu0 %v436
        %476 = vmatmul.bf16.gmra.mxu0 %v447
        %v477 = vpop.f32.mrf.mxu0
        %v478 = vadd.f32 %v443, %v477
        %v479 = vpop.f32.mrf.mxu0
        %480 = vdwg.mxu0
        %v481 = vmul.f32 %v465, %v388
        %v482 = vmul.f32 %v478, %v389
        %vm483 = vcmp.ge.f32.partialorder %v481, 0.0
        %vm484 = vcmp.ge.f32.partialorder %v482, 0.0
        %v485 = vmul.f32 %v481, 0.1
        %v486 = vmul.f32 %v482, 0.1
        %v487 = vsel %vm483, %v481, %v485
        %v488 = vsel %vm484, %v482, %v486
        %v489 = vpack.c.bf16 %v488, %v487
        %v491 = vunpack.c.l.b16 %v489
        %v492 = vunpack.c.h.b16 %v489
        %v493 = vpack.c.b16 %v491, %v491
        %v494 = vpack.c.b16 %v492, %v492
        %495 = vrot.lane.b32.xlu0 %v493, 1
        %v496 = vpop.permute.xlu0 %495
        %497 = vrot.lane.b32.xlu0 %v494, 1
        %v498 = vpop.permute.xlu0 %497
        %v499 = vsel %vm406, %v496, %v498
        %v501 = vsel %vm408, 0, %v496
        %v503 = vsel %vm412, %v499, 0
        %v506 = vrot.slane %v501, 4
        %v507 = vrot.slane %v503, 4
        %508 = vrot.lane.b32.xlu0 %v506, 127
        %v509 = vpop.permute.xlu0 %508
        %510 = vrot.lane.b32.xlu0 %v507, 127
        %v511 = vpop.permute.xlu0 %510
        %v512 = vsel %vm423, %v509, %v511
        %513 = vrot.lane.b32.xlu0 %v501, 126
        %v514 = vpop.permute.xlu0 %513
        %515 = vrot.lane.b32.xlu0 %v503, 126
        %v516 = vpop.permute.xlu0 %515
        %v517 = vsel %vm429, %v514, %v516
        %v519 = vsel %vm431, %v501, %v512
        %v522 = vsel %vm431, %v503, %v511
        %v524 = vld [vmem:[%s3] sm:$0xf]
        %v525 = vld [vmem:[%s4] sm:$0xff]
        %527 = vset.pattern.permute.xlu0 0
        %528 = vperm.xlu0 %527, %v525
        %v529 = vpop.permute.xlu0 %528
        %v532 = vsel %vm445, %v524, 0
        %v535 = vsel %vm431, %v517, 0
        %v538 = vsel %vm431, %v516, 0
        %540 = vmatpush.bf16.msra.mxu0 0
        %541 = vmatpush.bf16.msra.mxu0 0
        %542 = vmatpush.bf16.msra.mxu0 0
        %543 = vmatpush.bf16.msra.mxu0 0
        %544 = vmatpush.bf16.msra.mxu0 0
        %545 = vmatpush.bf16.msra.mxu0 0
        %546 = vmatpush.bf16.msra.mxu0 %v535
        %547 = vmatpush.bf16.msra.mxu0 %v519
        %548 = vmatmul.bf16.gmra.mxu0 %v532
        %v549 = vpop.f32.mrf.mxu0
        %v550 = vadd.f32 %v529, %v549
        %v551 = vpop.f32.mrf.mxu0
        %552 = vdwg.mxu0
        %553 = vmatpush.bf16.msra.mxu0 0
        %554 = vmatpush.bf16.msra.mxu0 0
        %555 = vmatpush.bf16.msra.mxu0 0
        %556 = vmatpush.bf16.msra.mxu0 0
        %557 = vmatpush.bf16.msra.mxu0 0
        %558 = vmatpush.bf16.msra.mxu0 0
        %559 = vmatpush.bf16.msra.mxu0 %v538
        %560 = vmatpush.bf16.msra.mxu0 %v522
        %561 = vmatmul.bf16.gmra.mxu0 %v532
        %v562 = vpop.f32.mrf.mxu0
        %v563 = vadd.f32 %v529, %v562
        %v564 = vpop.f32.mrf.mxu0
        %565 = vdwg.mxu0
        %v566 = vmul.f32 %v550, %v388
        %v567 = vmul.f32 %v563, %v389
        %v568 = vadd.f32 %v370, %v566
        %v569 = vadd.f32 %v371, %v567
        %vm570 = vcmp.ge.f32.partialorder %v568, 0.0
        %vm571 = vcmp.ge.f32.partialorder %v569, 0.0
        %v572 = vmul.f32 %v568, 0.1
        %v573 = vmul.f32 %v569, 0.1
        %v574 = vsel %vm570, %v568, %v572
        %v575 = vsel %vm571, %v569, %v573
        %v576 = vpack.c.bf16 %v575, %v574
        %v578 = vunpack.c.l.b16 %v576
        %v579 = vunpack.c.h.b16 %v576
        %v580 = vpack.c.b16 %v578, %v578
        %v581 = vpack.c.b16 %v579, %v579
        %582 = vrot.lane.b32.xlu0 %v580, 3
        %v583 = vpop.permute.xlu0 %582
        %584 = vrot.lane.b32.xlu0 %v581, 3
        %v585 = vpop.permute.xlu0 %584
        %vm586 = vcmask 23552
        %v587 = vsel %vm586, %v583, %v585
        %vm588 = vcmask 23552
        %v590 = vsel %vm588, 0, %v583
        %vm591 = vcmask 121856
        %v593 = vsel %vm591, %v587, 0
        %v596 = vrot.slane %v590, 4
        %v597 = vrot.slane %v593, 4
        %598 = vrot.lane.b32.xlu0 %v596, 125
        %v599 = vpop.permute.xlu0 %598
        %600 = vrot.lane.b32.xlu0 %v597, 125
        %v601 = vpop.permute.xlu0 %600
        %vm602 = vcmask 1022976
        %v603 = vsel %vm602, %v599, %v601
        %604 = vrot.lane.b32.xlu0 %v590, 122
        %v605 = vpop.permute.xlu0 %604
        %606 = vrot.lane.b32.xlu0 %v593, 122
        %v607 = vpop.permute.xlu0 %606
        %vm608 = vcmask 998400
        %v609 = vsel %vm608, %v605, %v607
        %v611 = vsel %vm431, %v590, %v603
        %v614 = vsel %vm431, %v593, %v601
        %v616 = vld [vmem:[%s5] sm:$0xf]
        %v617 = vld [vmem:[%s6] sm:$0xff]
        %619 = vset.pattern.permute.xlu0 0
        %620 = vperm.xlu0 %619, %v617
        %v621 = vpop.permute.xlu0 %620
        %v624 = vsel %vm445, %v616, 0
        %v627 = vsel %vm431, %v609, 0
        %v630 = vsel %vm431, %v607, 0
        %632 = vmatpush.bf16.msra.mxu0 0
        %633 = vmatpush.bf16.msra.mxu0 0
        %634 = vmatpush.bf16.msra.mxu0 0
        %635 = vmatpush.bf16.msra.mxu0 0
        %636 = vmatpush.bf16.msra.mxu0 0
        %637 = vmatpush.bf16.msra.mxu0 0
        %638 = vmatpush.bf16.msra.mxu0 %v627
        %639 = vmatpush.bf16.msra.mxu0 %v611
        %640 = vmatmul.bf16.gmra.mxu0 %v624
        %v641 = vpop.f32.mrf.mxu0
        %v642 = vadd.f32 %v621, %v641
        %v643 = vpop.f32.mrf.mxu0
        %644 = vdwg.mxu0
        %645 = vmatpush.bf16.msra.mxu0 0
        %646 = vmatpush.bf16.msra.mxu0 0
        %647 = vmatpush.bf16.msra.mxu0 0
        %648 = vmatpush.bf16.msra.mxu0 0
        %649 = vmatpush.bf16.msra.mxu0 0
        %650 = vmatpush.bf16.msra.mxu0 0
        %651 = vmatpush.bf16.msra.mxu0 %v630
        %652 = vmatpush.bf16.msra.mxu0 %v614
        %653 = vmatmul.bf16.gmra.mxu0 %v624
        %v654 = vpop.f32.mrf.mxu0
        %v655 = vadd.f32 %v621, %v654
        %v656 = vpop.f32.mrf.mxu0
        %657 = vdwg.mxu0
        %v658 = vmul.f32 %v642, %v388
        %v659 = vmul.f32 %v655, %v389
        %vm660 = vcmp.ge.f32.partialorder %v658, 0.0
        %vm661 = vcmp.ge.f32.partialorder %v659, 0.0
        %v662 = vmul.f32 %v658, 0.1
        %v663 = vmul.f32 %v659, 0.1
        %v664 = vsel %vm660, %v658, %v662
        %v665 = vsel %vm661, %v659, %v663
        %v666 = vpack.c.bf16 %v665, %v664
        %v668 = vunpack.c.l.b16 %v666
        %v669 = vunpack.c.h.b16 %v666
        %v670 = vpack.c.b16 %v668, %v668
        %v671 = vpack.c.b16 %v669, %v669
        %672 = vrot.lane.b32.xlu0 %v670, 1
        %v673 = vpop.permute.xlu0 %672
        %674 = vrot.lane.b32.xlu0 %v671, 1
        %v675 = vpop.permute.xlu0 %674
        %v676 = vsel %vm406, %v673, %v675
        %v678 = vsel %vm408, 0, %v673
        %v680 = vsel %vm412, %v676, 0
        %v683 = vrot.slane %v678, 4
        %v684 = vrot.slane %v680, 4
        %685 = vrot.lane.b32.xlu0 %v683, 127
        %v686 = vpop.permute.xlu0 %685
        %687 = vrot.lane.b32.xlu0 %v684, 127
        %v688 = vpop.permute.xlu0 %687
        %v689 = vsel %vm423, %v686, %v688
        %690 = vrot.lane.b32.xlu0 %v678, 126
        %v691 = vpop.permute.xlu0 %690
        %692 = vrot.lane.b32.xlu0 %v680, 126
        %v693 = vpop.permute.xlu0 %692
        %v694 = vsel %vm429, %v691, %v693
        %v696 = vsel %vm431, %v678, %v689
        %v699 = vsel %vm431, %v680, %v688
        %v701 = vld [vmem:[%s7] sm:$0xf]
        %v702 = vld [vmem:[%s8] sm:$0xff]
        %704 = vset.pattern.permute.xlu0 0
        %705 = vperm.xlu0 %704, %v702
        %v706 = vpop.permute.xlu0 %705
        %v709 = vsel %vm445, %v701, 0
        %v712 = vsel %vm431, %v694, 0
        %v715 = vsel %vm431, %v693, 0
        %717 = vmatpush.bf16.msra.mxu0 0
        %718 = vmatpush.bf16.msra.mxu0 0
        %719 = vmatpush.bf16.msra.mxu0 0
        %720 = vmatpush.bf16.msra.mxu0 0
        %721 = vmatpush.bf16.msra.mxu0 0
        %722 = vmatpush.bf16.msra.mxu0 0
        %723 = vmatpush.bf16.msra.mxu0 %v712
        %724 = vmatpush.bf16.msra.mxu0 %v696
        %725 = vmatmul.bf16.gmra.mxu0 %v709
        %v726 = vpop.f32.mrf.mxu0
        %v727 = vadd.f32 %v706, %v726
        %v728 = vpop.f32.mrf.mxu0
        %729 = vdwg.mxu0
        %730 = vmatpush.bf16.msra.mxu0 0
        %731 = vmatpush.bf16.msra.mxu0 0
        %732 = vmatpush.bf16.msra.mxu0 0
        %733 = vmatpush.bf16.msra.mxu0 0
        %734 = vmatpush.bf16.msra.mxu0 0
        %735 = vmatpush.bf16.msra.mxu0 0
        %736 = vmatpush.bf16.msra.mxu0 %v715
        %737 = vmatpush.bf16.msra.mxu0 %v699
        %738 = vmatmul.bf16.gmra.mxu0 %v709
        %v739 = vpop.f32.mrf.mxu0
        %v740 = vadd.f32 %v706, %v739
        %v741 = vpop.f32.mrf.mxu0
        %742 = vdwg.mxu0
        %v743 = vadd.f32 %v568, %v727
        %v744 = vadd.f32 %v569, %v740
        %747 = vrot.lane.b32.xlu0 %v743, 122
        %v748 = vpop.permute.xlu0 %747
        %749 = vrot.lane.b32.xlu0 %v744, 122
        %v750 = vpop.permute.xlu0 %749
        %vm751 = vcmask 998400
        %v752 = vsel %vm751, %v748, %v750
        %754 = vst [vmem:[%s368] sm:$0xff] %v752
        %s755 = sand.u32 %s244, 1
        %s756 = scalar_lea.sflag [#allocation4], %s755
        %s757 = sand.u32 %s244, 1
        %s758 = smul.addr %s757, 8
        %s759 = scalar_lea.vmem [#allocation5], %s758
        // Predicated region
        $region61: #{tpu_custom_call.1} parent=55 // pred_check
          %p760 = pneg %p254
        $region62: #{tpu_custom_call.1} parent=55 // pred_check_branch
          %762 = sbr.rel (%p760) target = $region64
        $region63: #{tpu_custom_call.1} parent=55 // pred_region
          %764 = vsyncadd %s756, 0
          %s765 = sadd.s32 %s31, %s30
          %s766 = smul.addr %s765, 8
          %s767 = scalar_lea.hbm %s9, %s766
          %s769 = sshll.u32 %s759, 4
          %s770 = int_to_ptr.vmem [resolvable:$true] %s769
          %s771 = sshll.u32 %s767, 4
          %s772 = int_to_ptr.hbm [resolvable:$true] %s771
          %774 = dma.vmem_to_hbm [thread:$0]  %s770, 128, %s772, %s756
        $region64: #{tpu_custom_call.1} parent=55 // pred_fallthru
          _
      $region56: #{tpu_custom_call.1} parent=5 // pred_fallthru
        _
      %p775 = scmp.le.s32.totalorder 2, %s21
      // Predicated region
      $region65: #{tpu_custom_call.1} parent=5 // pred_check
        %p776 = pneg %p775
      $region66: #{tpu_custom_call.1} parent=5 // pred_check_branch
        %778 = sbr.rel (%p776) target = $region68
      $region67: #{tpu_custom_call.1} parent=5 // pred_region
        %s779 = ssub.s32 %s21, 2
        // Predicated region
        $region69: #{tpu_custom_call.1} parent=67 // pred_check
          %p780 = pneg %p260
        $region70: #{tpu_custom_call.1} parent=67 // pred_check_branch
          %782 = sbr.rel (%p780) target = $region72
        $region71: #{tpu_custom_call.1} parent=67 // pred_region
          %s783 = sand.u32 %s245, 1
          %s784 = scalar_lea.sflag [#allocation4], %s783
          %s785 = sand.u32 %s245, 1
          %s786 = smul.addr %s785, 8
          %s787 = scalar_lea.vmem [#allocation5], %s786
          %789 = dma.done %s784, 128
        $region72: #{tpu_custom_call.1} parent=67 // pred_fallthru
          _
      $region68: #{tpu_custom_call.1} parent=5 // pred_fallthru
        _
    $region6: #{tpu_custom_call.1} parent=1 // loop_footer
      %s25 = sadd.s32 1, %s21
    $region7: #{tpu_custom_call.1} parent=1 // loop_footer_branch
      %20 = sbr.rel target = $region3
    $region8: #{tpu_custom_call.1} parent=1 // loop_exit
      _
    %790 = vsyncpa [#allocation3], 1
    %s791 = scalar_lea.sflag [#allocation3], 1
    %792 = vsyncpa %s791, 1
    %793 = vsyncpa [#allocation4], 1
    %s794 = scalar_lea.sflag [#allocation4], 1
    %795 = vsyncpa %s794, 1

</llo_original>
